<compile_context>
chip_gen: v7x
topology: tpu7x:2x2x1
jax: 0.10.0
libtpu: 0.0.40
codegen_flags: <defaults>
</compile_context>

<pallas_src>
import jax
import jax.numpy as jnp
from jax import lax
from jax.experimental import pallas as pl
from jax.experimental.pallas import tpu as pltpu

K = 7            # spatial-attention kernel size
PAD = K // 2     # "same" padding


def _sigmoid(z):
    # Numerically stable sigmoid; tanh runs on the EUP slot (free-ish).
    return 0.5 * (jnp.tanh(0.5 * z) + 1.0)


def cga_kernel(x_ref, w1_ref, w2_ref, msp_ref, o_ref):
    """Processes one batch chunk. x_ref: (Bt, C, H*W) VMEM tile (lane-dense)."""
    # Elementwise compute dtype: keep bf16 when I/O is bf16 (v6e/v7x VPUs are
    # bf16-native), otherwise f32.  Reductions / matmul acc are always f32.
    ew_dtype = jnp.bfloat16 if x_ref.dtype == jnp.bfloat16 else jnp.float32
    x = x_ref[...].astype(ew_dtype)                            # (Bt, C, HW)

    # ---- channel attention: GAP -> 1x1 -> ReLU -> 1x1 -> sigmoid ----
    gap = jnp.mean(x, axis=2, dtype=jnp.float32)               # (Bt, C)   lane reduce
    hidden = jnp.maximum(
        jnp.dot(gap, w1_ref[...].astype(jnp.float32),
                preferred_element_type=jnp.float32), 0.0)      # (Bt, Cr)
    cw = _sigmoid(
        jnp.dot(hidden, w2_ref[...].astype(jnp.float32),
                preferred_element_type=jnp.float32))           # (Bt, C)

    x_ch = x * cw.astype(ew_dtype)[:, :, None]                 # lane-dense VPU mul

    # ---- spatial attention: mean_c / max_c maps -> fused 7x7 conv -> sigmoid ----
    avg_map = jnp.mean(x_ch, axis=1, dtype=jnp.float32)        # (Bt, HW)  sublane reduce
    max_map = jnp.max(x_ch, axis=1).astype(jnp.float32)        # (Bt, HW)  sublane reduce
    maps = jnp.concatenate([avg_map, max_map], axis=1)         # (Bt, 2*HW)
    # 7x7 SAME conv on [avg; max] pre-folded into one (2*HW, HW) matrix ->
    # a single MXU push/acc/pop instead of two.
    sp = jnp.dot(maps.astype(msp_ref.dtype), msp_ref[...],
                 preferred_element_type=jnp.float32)           # (Bt, HW)
    sw = _sigmoid(sp).astype(ew_dtype)

    # Lane-dense store (last dim HW is a multiple of 128 -> unmasked vst).
    o_ref[...] = (x_ch * sw[:, None, :]).astype(o_ref.dtype)


def _conv7x7_as_matrix(wsp, H, W, dtype):
    """Fold the 7x7 (2 -> 1 channel) SAME cross-correlation into a single
    (2*H*W, H*W) matrix M so that conv([avg;max])_flat = [avg_flat, max_flat] @ M.
    Zero padding is encoded in the matrix.
    # TODO(synk): for feature maps much larger than 32x32 switch to a
    # pltpu.roll-based 49-tap shifted-add conv; the dense matrix is O(HW^2)."""
    wsp = wsp.astype(jnp.float32)
    yi = jnp.arange(H)[:, None, None, None]                    # input row
    xi = jnp.arange(W)[None, :, None, None]                    # input col
    yo = jnp.arange(H)[None, None, :, None]                    # output row
    xo = jnp.arange(W)[None, None, None, :]                    # output col
    dy = yi - yo + PAD                                         # kernel tap row
    dx = xi - xo + PAD                                         # kernel tap col
    valid = (dy >= 0) & (dy < K) & (dx >= 0) & (dx < K)
    dyc = jnp.clip(dy, 0, K - 1)
    dxc = jnp.clip(dx, 0, K - 1)

    def one(c):
        taps = jnp.where(valid, wsp[c][dyc, dxc], 0.0)         # (H, W, H, W)
        return taps.reshape(H * W, H * W)

    return jnp.concatenate([one(0), one(1)], axis=0).astype(dtype)


def _vmem_limit_bytes():
    """Generation-aware scoped-VMEM limit with headroom for compiler scratch."""
    try:
        phys = int(pltpu.get_tpu_info().vmem_capacity_bytes)
    except Exception:
        phys = 64 << 20            # conservative fallback: v7x per-TC size
    # v5e/v6e (128 MiB) -> 96 MiB, v7x (64 MiB) -> 48 MiB
    return int(min(phys * 3 // 4, 100 << 20))


def _pick_batch_tile(n, c, hw, io_itemsize, ew_itemsize, weight_bytes, vmem_limit):
    """Largest Bt whose total live VMEM (double-buffered in+out blocks, compute
    temporaries, double-buffered weights) fits `vmem_limit`, capped to keep a
    multi-step grid (megacore sharding + prefetch overlap), rounded to a
    multiple of 8 sublanes when possible."""
    per_image = (2 * 2 * c * hw * io_itemsize   # double-buffered in + out blocks
                 + 2 * c * hw * ew_itemsize     # x (compute dtype) + x_ch temporaries
                 + 8 * hw * 4)                  # maps / sp / sw f32 rows (slack)
    budget = vmem_limit - 2 * weight_bytes - (2 << 20)
    bt_max = max(1, budget // per_image)
    if n >= 64:
        bt_cap = pl.cdiv(n, 8)
    elif n >= 32:
        bt_cap = pl.cdiv(n, 4)
    elif n >= 8:
        bt_cap = pl.cdiv(n, 2)
    else:
        bt_cap = n
    bt = int(min(bt_max, bt_cap, n))
    if bt >= 8:
        bt = (bt // 8) * 8
    return max(1, bt)


@jax.jit
def content_guided_attention(x_nchw, w1, w2, wsp):
    """x_nchw: (N, C, H, W); w1: (C, Cr); w2: (Cr, C); wsp: (2, 7, 7)."""
    N, C, H, W = x_nchw.shape
    Cr = w1.shape[1]
    HW = H * W

    io_dtype = x_nchw.dtype
    # bf16 conv matrix / maps when I/O is bf16 (bf16-native MXU, half the
    # weight DMA + VMEM); keep f32 weights for f32 I/O to preserve precision.
    w_dtype = jnp.bfloat16 if io_dtype == jnp.bfloat16 else jnp.float32
    ew_itemsize = 2 if io_dtype == jnp.bfloat16 else 4

    x_flat = x_nchw.reshape(N, C, HW)                          # free (row-major)
    m_sp = _conv7x7_as_matrix(wsp, H, W, w_dtype)              # (2*HW, HW)

    vmem_limit = _vmem_limit_bytes()
    weight_bytes = (2 * HW * HW * jnp.dtype(w_dtype).itemsize
                    + (C * Cr + Cr * C) * 4)
    bt = _pick_batch_tile(N, C, HW, jnp.dtype(io_dtype).itemsize,
                          ew_itemsize, weight_bytes, vmem_limit)
    grid = (pl.cdiv(N, bt),)                 # partial last block is masked by the runtime

    out_flat = pl.pallas_call(
        cga_kernel,
        out_shape=jax.ShapeDtypeStruct((N, C, HW), io_dtype),
        grid_spec=pltpu.PrefetchScalarGridSpec(
            num_scalar_prefetch=0,
            grid=grid,
            in_specs=[
                pl.BlockSpec((bt, C, HW), lambda n: (n, 0, 0)),
                pl.BlockSpec((C, Cr), lambda n: (0, 0)),
                pl.BlockSpec((Cr, C), lambda n: (0, 0)),
                pl.BlockSpec((2 * HW, HW), lambda n: (0, 0)),
            ],
            out_specs=pl.BlockSpec((bt, C, HW), lambda n: (n, 0, 0)),
        ),
        # Independent batch chunks -> shard the grid across both TensorCores on v7x.
        compiler_params=pltpu.CompilerParams(
            dimension_semantics=("parallel",),
            vmem_limit_bytes=vmem_limit),
    )(x_flat, w1, w2, m_sp)
    return out_flat.reshape(N, C, H, W)


def ref_forward(x_nchw, w1, w2, wsp):
    """Pure-JAX reference (NCHW), matching the PyTorch module semantics
    (all convs bias=False, as in the module definition)."""
    gap = jnp.mean(x_nchw, axis=(2, 3))                        # (N, C)
    hidden = jnp.maximum(gap @ w1, 0.0)                        # (N, Cr)
    cw = jax.nn.sigmoid(hidden @ w2)                           # (N, C)
    x_ch = x_nchw * cw[:, :, None, None]
    avg = jnp.mean(x_ch, axis=1, keepdims=True)
    mx = jnp.max(x_ch, axis=1, keepdims=True)
    sp_in = jnp.concatenate([avg, mx], axis=1)                 # (N, 2, H, W)
    conv = lax.conv_general_dilated(
        sp_in, wsp[None].astype(sp_in.dtype), (1, 1), "SAME",
        dimension_numbers=("NCHW", "OIHW", "NCHW"))
    sw = jax.nn.sigmoid(conv)
    return x_ch * sw


if __name__ == "__main__":
    # Shapes consistent with the module: in_channels=32, reduction=16 -> Cr=2.
    N, C, H, W = 2, 32, 16, 16
    reduction = 16
    Cr = C // reduction

    key = jax.random.PRNGKey(0)
    k1, k2, k3, k4 = jax.random.split(key, 4)
    x = jax.random.normal(k1, (N, C, H, W), jnp.float32)        # PyTorch-style NCHW
    w1 = 0.1 * jax.random.normal(k2, (C, Cr), jnp.float32)      # 1x1 conv #1 (C -> Cr), transposed torch weight
    w2 = 0.1 * jax.random.normal(k3, (Cr, C), jnp.float32)      # 1x1 conv #2 (Cr -> C)
    wsp = 0.1 * jax.random.normal(k4, (2, K, K), jnp.float32)   # 7x7 conv, 2 -> 1

    out = content_guided_attention(x, w1, w2, wsp)
    out = jax.block_until_ready(out)

    ref = ref_forward(x, w1, w2, wsp)
    assert out.shape == (N, C, H, W)
    # Tolerance allows for MXU f32 accumulation-order differences vs lax.conv.
    assert jnp.allclose(out, ref, atol=1e-3, rtol=1e-3), "mismatch vs reference"

    print("KERNEL_OK")
</pallas_src>

<mosaic_0001>
module attributes {stable_mosaic.version = 11 : i64} {
  func.func @cga_kernel(%arg0: i32, %arg1: memref<2x32x256xf32, #tpu.memory_space<vmem>>, %arg2: memref<32x2xf32, #tpu.memory_space<vmem>>, %arg3: memref<2x32xf32, #tpu.memory_space<vmem>>, %arg4: memref<512x256xf32, #tpu.memory_space<vmem>>, %arg5: memref<2x32x256xf32, #tpu.memory_space<vmem>>) attributes {dimension_semantics = [#tpu.dimension_semantics<parallel>], iteration_bounds = array<i64: 1>, scalar_prefetch = 0 : i64, scratch_operands = 0 : i64, tpu.core_type = #tpu.core_type<tc>, window_params = [{transform_indices = @transform_0, window_bounds = array<i64: 2, 32, 256>}, {pipeline_mode = #tpu.pipeline_mode<synchronous>, transform_indices = @transform_1, window_bounds = array<i64: 32, 2>}, {pipeline_mode = #tpu.pipeline_mode<synchronous>, transform_indices = @transform_2, window_bounds = array<i64: 2, 32>}, {pipeline_mode = #tpu.pipeline_mode<synchronous>, transform_indices = @transform_3, window_bounds = array<i64: 512, 256>}, {transform_indices = @transform_4, window_bounds = array<i64: 2, 32, 256>}]} {
    %c0 = arith.constant 0 : index
    %c0_0 = arith.constant 0 : index
    %c0_1 = arith.constant 0 : index
    %0 = vector.load %arg1[%c0, %c0_0, %c0_1] : memref<2x32x256xf32, #tpu.memory_space<vmem>>, vector<2x32x256xf32>
    %cst = arith.constant dense<0.000000e+00> : vector<2x32xf32>
    %1 = vector.multi_reduction <add>, %0, %cst [2] : vector<2x32x256xf32> to vector<2x32xf32>
    %cst_2 = arith.constant 2.560000e+02 : f32
    %2 = vector.broadcast %cst_2 : f32 to vector<2x32xf32>
    %3 = arith.divf %1, %2 : vector<2x32xf32>
    %c0_3 = arith.constant 0 : index
    %c0_4 = arith.constant 0 : index
    %4 = vector.load %arg2[%c0_3, %c0_4] : memref<32x2xf32, #tpu.memory_space<vmem>>, vector<32x2xf32>
    %cst_5 = arith.constant dense<0.000000e+00> : vector<2x2xf32>
    %5 = tpu.matmul %3, %4, %cst_5 {dimension_numbers = #tpu.dot_dimension_numbers<[1], [0], [0], [1], [0, 0, 1, 1], [], []>} : vector<2x32xf32>, vector<32x2xf32>, vector<2x2xf32> -> vector<2x2xf32>
    %cst_6 = arith.constant 0.000000e+00 : f32
    %6 = vector.broadcast %cst_6 : f32 to vector<2x2xf32>
    %7 = arith.maximumf %5, %6 : vector<2x2xf32>
    %c0_7 = arith.constant 0 : index
    %c0_8 = arith.constant 0 : index
    %8 = vector.load %arg3[%c0_7, %c0_8] : memref<2x32xf32, #tpu.memory_space<vmem>>, vector<2x32xf32>
    %cst_9 = arith.constant dense<0.000000e+00> : vector<2x32xf32>
    %9 = tpu.matmul %7, %8, %cst_9 {dimension_numbers = #tpu.dot_dimension_numbers<[1], [0], [0], [1], [0, 0, 1, 1], [], []>} : vector<2x2xf32>, vector<2x32xf32>, vector<2x32xf32> -> vector<2x32xf32>
    %cst_10 = arith.constant 5.000000e-01 : f32
    %10 = vector.broadcast %cst_10 : f32 to vector<2x32xf32>
    %11 = arith.mulf %10, %9 : vector<2x32xf32>
    %12 = math.tanh %11 : vector<2x32xf32>
    %cst_11 = arith.constant 1.000000e+00 : f32
    %13 = vector.broadcast %cst_11 : f32 to vector<2x32xf32>
    %14 = arith.addf %12, %13 : vector<2x32xf32>
    %cst_12 = arith.constant 5.000000e-01 : f32
    %15 = vector.broadcast %cst_12 : f32 to vector<2x32xf32>
    %16 = arith.mulf %15, %14 : vector<2x32xf32>
    %17 = vector.shape_cast %16 : vector<2x32xf32> to vector<2x32x1xf32>
    %18 = vector.broadcast %17 : vector<2x32x1xf32> to vector<2x32x256xf32>
    %19 = arith.mulf %0, %18 : vector<2x32x256xf32>
    %cst_13 = arith.constant dense<0.000000e+00> : vector<2x256xf32>
    %20 = vector.multi_reduction <add>, %19, %cst_13 [1] : vector<2x32x256xf32> to vector<2x256xf32>
    %cst_14 = arith.constant 3.200000e+01 : f32
    %21 = vector.broadcast %cst_14 : f32 to vector<2x256xf32>
    %22 = arith.divf %20, %21 : vector<2x256xf32>
    %cst_15 = arith.constant dense<0xFF800000> : vector<2x256xf32>
    %23 = vector.multi_reduction <maximumf>, %19, %cst_15 [1] : vector<2x32x256xf32> to vector<2x256xf32>
    %24 = tpu.concatenate %22, %23 in 1 : vector<2x256xf32>, vector<2x256xf32> -> vector<2x512xf32>
    %c0_16 = arith.constant 0 : index
    %c0_17 = arith.constant 0 : index
    %25 = vector.load %arg4[%c0_16, %c0_17] : memref<512x256xf32, #tpu.memory_space<vmem>>, vector<512x256xf32>
    %cst_18 = arith.constant dense<0.000000e+00> : vector<2x256xf32>
    %26 = tpu.matmul %24, %25, %cst_18 {dimension_numbers = #tpu.dot_dimension_numbers<[1], [0], [0], [1], [0, 0, 1, 1], [], []>} : vector<2x512xf32>, vector<512x256xf32>, vector<2x256xf32> -> vector<2x256xf32>
    %cst_19 = arith.constant 5.000000e-01 : f32
    %27 = vector.broadcast %cst_19 : f32 to vector<2x256xf32>
    %28 = arith.mulf %27, %26 : vector<2x256xf32>
    %29 = math.tanh %28 : vector<2x256xf32>
    %cst_20 = arith.constant 1.000000e+00 : f32
    %30 = vector.broadcast %cst_20 : f32 to vector<2x256xf32>
    %31 = arith.addf %29, %30 : vector<2x256xf32>
    %cst_21 = arith.constant 5.000000e-01 : f32
    %32 = vector.broadcast %cst_21 : f32 to vector<2x256xf32>
    %33 = arith.mulf %32, %31 : vector<2x256xf32>
    %34 = vector.shape_cast %33 : vector<2x256xf32> to vector<2x1x256xf32>
    %35 = vector.broadcast %34 : vector<2x1x256xf32> to vector<2x32x256xf32>
    %36 = arith.mulf %19, %35 : vector<2x32x256xf32>
    %c0_22 = arith.constant 0 : index
    %c0_23 = arith.constant 0 : index
    %c0_24 = arith.constant 0 : index
    %37 = vector.load %arg5[%c0_22, %c0_23, %c0_24] : memref<2x32x256xf32, #tpu.memory_space<vmem>>, vector<2x32x256xf32>
    tpu.vector_store %arg5[%c0_22, %c0_23, %c0_24], %36 {strides = array<i32>} : memref<2x32x256xf32, #tpu.memory_space<vmem>>, vector<2x32x256xf32>,
    return
  }
  func.func @transform_0(%arg0: i32) -> (i32, i32, i32) {
    %c0_i32 = arith.constant 0 : i32
    %c0_i32_0 = arith.constant 0 : i32
    %c0_i32_1 = arith.constant 0 : i32
    return %arg0, %c0_i32, %c0_i32_0 : i32, i32, i32
  }
  func.func @transform_1(%arg0: i32) -> (i32, i32) {
    %c0_i32 = arith.constant 0 : i32
    %c0_i32_0 = arith.constant 0 : i32
    %c0_i32_1 = arith.constant 0 : i32
    return %c0_i32, %c0_i32_0 : i32, i32
  }
  func.func @transform_2(%arg0: i32) -> (i32, i32) {
    %c0_i32 = arith.constant 0 : i32
    %c0_i32_0 = arith.constant 0 : i32
    %c0_i32_1 = arith.constant 0 : i32
    return %c0_i32, %c0_i32_0 : i32, i32
  }
  func.func @transform_3(%arg0: i32) -> (i32, i32) {
    %c0_i32 = arith.constant 0 : i32
    %c0_i32_0 = arith.constant 0 : i32
    %c0_i32_1 = arith.constant 0 : i32
    return %c0_i32, %c0_i32_0 : i32, i32
  }
  func.func @transform_4(%arg0: i32) -> (i32, i32, i32) {
    %c0_i32 = arith.constant 0 : i32
    %c0_i32_0 = arith.constant 0 : i32
    %c0_i32_1 = arith.constant 0 : i32
    return %arg0, %c0_i32, %c0_i32_0 : i32, i32, i32
  }
}

</mosaic_0001>

<llo_original>
// kernel: content_guided_attention.1
$region0: #{content_guided_attention.1}
  #allocation0 [shape = 'u32[]', space=smem, size = 0x4, offset = 0x4, fixed_abs, tag = 'smem constant byte address 0x4 - core index']
  #allocation1 [shape = 'u32[144,128]{1,0:T(1,128)}', space=vmem, size = 0x12000, scoped, tag = 'internal scratch']
  %s0 = inlined_call_operand.vmem [shape: f32[2,32,256], index: 0, kind: input, shape index: {}]
  %s1 = inlined_call_operand.vmem [shape: f32[32,2], index: 1, kind: input, shape index: {}]
  %s2 = inlined_call_operand.vmem [shape: f32[2,32], index: 2, kind: input, shape index: {}]
  %s3 = inlined_call_operand.vmem [shape: f32[512,256], index: 3, kind: input, shape index: {}]
  %s4 = inlined_call_operand.vmem [shape: f32[2,32,256], index: 4, kind: output, shape index: {}]
  %s5 = sld [smem:[#allocation0]]
  $region26: #{content_guided_attention.1} parent=0
    _
  %s7 = ssub.s32 1, %s5
  %s8 = scalar_select 0, %s7, %s5
  // Predicated region
  $region2: #{content_guided_attention.1} parent=0 // pred_check
    _
  $region3: #{content_guided_attention.1} parent=0 // pred_check_branch
    %10 = sbr.rel (0) target = $region5
  $region4: #{content_guided_attention.1} parent=0 // pred_region
    _
  $region5: #{content_guided_attention.1} parent=0 // pred_fallthru
    _
  // Predicated region
  $region6: #{content_guided_attention.1} parent=0 // pred_check
    _
  $region7: #{content_guided_attention.1} parent=0 // pred_check_branch
    %12 = sbr.rel (0) target = $region9
  $region8: #{content_guided_attention.1} parent=0 // pred_region
    _
  $region9: #{content_guided_attention.1} parent=0 // pred_fallthru
    _
  // Predicated region
  $region10: #{content_guided_attention.1} parent=0 // pred_check
    _
  $region11: #{content_guided_attention.1} parent=0 // pred_check_branch
    %14 = sbr.rel (0) target = $region13
  $region12: #{content_guided_attention.1} parent=0 // pred_region
    _
  $region13: #{content_guided_attention.1} parent=0 // pred_fallthru
    _
  // Predicated region
  $region14: #{content_guided_attention.1} parent=0 // pred_check
    _
  $region15: #{content_guided_attention.1} parent=0 // pred_check_branch
    %16 = sbr.rel (0) target = $region17
  $region16: #{content_guided_attention.1} parent=0 // pred_region
    _
  $region17: #{content_guided_attention.1} parent=0 // pred_fallthru
    _
  %v17 = vld [vmem:[%s0] sm:$0xff]
  %v18 = vld [vmem:[%s0 + $0x8] sm:$0xff]
  %v19 = vld [vmem:[%s0 + $0x10] sm:$0xff]
  %v20 = vld [vmem:[%s0 + $0x18] sm:$0xff]
  %v21 = vld [vmem:[%s0 + $0x20] sm:$0xff]
  %v22 = vld [vmem:[%s0 + $0x28] sm:$0xff]
  %v23 = vld [vmem:[%s0 + $0x30] sm:$0xff]
  %v24 = vld [vmem:[%s0 + $0x38] sm:$0xff]
  %v25 = vld [vmem:[%s0 + $0x40] sm:$0xff]
  %v26 = vld [vmem:[%s0 + $0x48] sm:$0xff]
  %v27 = vld [vmem:[%s0 + $0x50] sm:$0xff]
  %v28 = vld [vmem:[%s0 + $0x58] sm:$0xff]
  %v29 = vld [vmem:[%s0 + $0x60] sm:$0xff]
  %v30 = vld [vmem:[%s0 + $0x68] sm:$0xff]
  %v31 = vld [vmem:[%s0 + $0x70] sm:$0xff]
  %v32 = vld [vmem:[%s0 + $0x78] sm:$0xff]
  %v33 = vadd.f32 %v17, %v18
  %34 = vadd.xlane.f32.xlu0 %v33
  %v35 = vpop.xlane.xlu0 %34
  %v36 = vadd.f32 %v19, %v20
  %37 = vadd.xlane.f32.xlu0 %v36
  %v38 = vpop.xlane.xlu0 %37
  %v39 = vadd.f32 %v21, %v22
  %40 = vadd.xlane.f32.xlu0 %v39
  %v41 = vpop.xlane.xlu0 %40
  %v42 = vadd.f32 %v23, %v24
  %43 = vadd.xlane.f32.xlu0 %v42
  %v44 = vpop.xlane.xlu0 %43
  %v45 = vadd.f32 %v25, %v26
  %46 = vadd.xlane.f32.xlu0 %v45
  %v47 = vpop.xlane.xlu0 %46
  %v48 = vadd.f32 %v27, %v28
  %49 = vadd.xlane.f32.xlu0 %v48
  %v50 = vpop.xlane.xlu0 %49
  %v51 = vadd.f32 %v29, %v30
  %52 = vadd.xlane.f32.xlu0 %v51
  %v53 = vpop.xlane.xlu0 %52
  %v54 = vadd.f32 %v31, %v32
  %55 = vadd.xlane.f32.xlu0 %v54
  %v56 = vpop.xlane.xlu0 %55
  %v57 = vrcp.pop 256.0
  %v58 = vmul.f32 %v35, %v57
  %v59 = vmul.f32 %v38, %v57
  %v60 = vmul.f32 %v41, %v57
  %v61 = vmul.f32 %v44, %v57
  %v62 = vmul.f32 %v47, %v57
  %v63 = vmul.f32 %v50, %v57
  %v64 = vmul.f32 %v53, %v57
  %v65 = vmul.f32 %v56, %v57
  %v66 = vld [vmem:[%s1] sm:$0xff]
  %v67 = vld [vmem:[%s1 + $0x8] sm:$0xff]
  %v68 = vld [vmem:[%s1 + $0x10] sm:$0xff]
  %v69 = vld [vmem:[%s1 + $0x18] sm:$0xff]
  %v78 = vlaneseq
  %v79 = vand.u32 %v78, 127
  %v80 = vlaneseq
  %v81 = vshrl.u32 %v80, 7
  %v82 = vsub.s32 %v79, %v81
  %v83 = vrot.slane %v58, %v82
  %v84 = vadd.s32 %v79, 4294967288
  %v85 = vlaneseq
  %v86 = vshrl.u32 %v85, 7
  %v87 = vsub.s32 %v84, %v86
  %v88 = vrot.slane %v59, %v87
  %vm89 = vcmask 130112
  %v90 = vsel %vm89, %v88, %v83
  %v91 = vadd.s32 %v79, 4294967280
  %v92 = vlaneseq
  %v93 = vshrl.u32 %v92, 7
  %v94 = vsub.s32 %v91, %v93
  %v95 = vrot.slane %v60, %v94
  %vm96 = vcmask 195712
  %v97 = vsel %vm96, %v95, %v90
  %v98 = vadd.s32 %v79, 4294967272
  %v99 = vlaneseq
  %v100 = vshrl.u32 %v99, 7
  %v101 = vsub.s32 %v98, %v100
  %v102 = vrot.slane %v61, %v101
  %vm103 = vcmask 261312
  %v104 = vsel %vm103, %v102, %v97
  %v105 = vlaneseq
  %v106 = vshrl.u32 %v105, 7
  %v107 = vsub.s32 %v79, %v106
  %v108 = vrot.slane %v62, %v107
  %v109 = vlaneseq
  %v110 = vshrl.u32 %v109, 7
  %v111 = vsub.s32 %v84, %v110
  %v112 = vrot.slane %v63, %v111
  %v113 = vsel %vm89, %v112, %v108
  %v114 = vlaneseq
  %v115 = vshrl.u32 %v114, 7
  %v116 = vsub.s32 %v91, %v115
  %v117 = vrot.slane %v64, %v116
  %v118 = vsel %vm96, %v117, %v113
  %v119 = vlaneseq
  %v120 = vshrl.u32 %v119, 7
  %v121 = vsub.s32 %v98, %v120
  %v122 = vrot.slane %v65, %v121
  %v123 = vsel %vm103, %v122, %v118
  %vm124 = vcmask 1041409
  %v125 = vsel %vm124, %v123, %v104
  %vm126 = vcmask 261120
  %v127 = vsel %vm126, %v125, 0
  %129 = vmatprep.subr.mxu0 0.0
  %130 = vmatpush1.msra.mxu0 %v66
  %131 = vmatprep.subr.mxu0 0.0
  %132 = vmatpush1.msra.mxu0 %v67
  %133 = vmatprep.subr.mxu0 0.0
  %134 = vmatpush1.msra.mxu0 %v68
  %135 = vmatprep.subr.mxu0 0.0
  %136 = vmatpush1.msra.mxu0 %v69
  %137 = vmatprep.subr.mxu0 0.0
  %138 = vmatpush1.msra.mxu0 0.0
  %139 = vmatprep.subr.mxu0 0.0
  %140 = vmatpush1.msra.mxu0 0.0
  %141 = vmatprep.subr.mxu0 0.0
  %142 = vmatpush1.msra.mxu0 0.0
  %143 = vmatprep.subr.mxu0 0.0
  %144 = vmatpush1.msra.mxu0 0.0
  %145 = vmatprep.subr.mxu0 0.0
  %146 = vmatpush1.msra.mxu0 0.0
  %147 = vmatprep.subr.mxu0 0.0
  %148 = vmatpush1.msra.mxu0 0.0
  %149 = vmatprep.subr.mxu0 0.0
  %150 = vmatpush1.msra.mxu0 0.0
  %151 = vmatprep.subr.mxu0 0.0
  %152 = vmatpush1.msra.mxu0 0.0
  %153 = vmatprep.subr.mxu0 0.0
  %154 = vmatpush1.msra.mxu0 0.0
  %155 = vmatprep.subr.mxu0 0.0
  %156 = vmatpush1.msra.mxu0 0.0
  %157 = vmatprep.subr.mxu0 0.0
  %158 = vmatpush1.msra.mxu0 0.0
  %159 = vmatprep.subr.mxu0 0.0
  %160 = vmatpush1.msra.mxu0 0.0
  %161 = vmatprep.subr.mxu0 0.0
  %162 = vmatpush1.msra.mxu0 0.0
  %163 = vmatprep.subr.mxu0 0.0
  %164 = vmatpush1.msra.mxu0 0.0
  %165 = vmatprep.subr.mxu0 0.0
  %166 = vmatpush1.msra.mxu0 0.0
  %167 = vmatprep.subr.mxu0 0.0
  %168 = vmatpush1.msra.mxu0 0.0
  %169 = vmatprep.subr.mxu0 0.0
  %170 = vmatpush1.msra.mxu0 0.0
  %171 = vmatprep.subr.mxu0 0.0
  %172 = vmatpush1.msra.mxu0 0.0
  %173 = vmatprep.subr.mxu0 0.0
  %174 = vmatpush1.msra.mxu0 0.0
  %175 = vmatprep.subr.mxu0 0.0
  %176 = vmatpush1.msra.mxu0 0.0
  %177 = vmatprep.subr.mxu0 0.0
  %178 = vmatpush1.msra.mxu0 0.0
  %179 = vmatprep.subr.mxu0 0.0
  %180 = vmatpush1.msra.mxu0 0.0
  %181 = vmatprep.subr.mxu0 0.0
  %182 = vmatpush1.msra.mxu0 0.0
  %183 = vmatprep.subr.mxu0 0.0
  %184 = vmatpush1.msra.mxu0 0.0
  %185 = vmatprep.subr.mxu0 0.0
  %186 = vmatpush1.msra.mxu0 0.0
  %187 = vmatprep.subr.mxu0 0.0
  %188 = vmatpush1.msra.mxu0 0.0
  %189 = vmatprep.subr.mxu0 0.0
  %190 = vmatpush1.msra.mxu0 0.0
  %191 = vmatprep.subr.mxu0 0.0
  %192 = vmatpush1.msra.mxu0 0.0
  %193 = vmatprep.mubr.f32.mxu0 0.0
  %194 = vmatmul.mubr.f32.gmra.mrb[0].mxu0 %v127
  %v195 = vpop.f32.mrb[0].mxu0
  %v196 = vadd.f32 0.0, %v195
  %v197 = vpop.f32.mrb[0].mxu0
  %198 = vdwg.mxu0
  %v199 = vmax.f32 %v196, 0.0
  %v200 = vld [vmem:[%s2] sm:$0x3]
  %vm201 = vcmask 15360
  %v203 = vsel %vm201, %v199, 0
  %vm205 = vcmask 1041408
  %v207 = vsel %vm205, %v200, 0
  %209 = vmatprep.subr.mxu0 0.0
  %210 = vmatpush1.msra.mxu0 %v207
  %211 = vmatprep.subr.mxu0 0.0
  %212 = vmatpush1.msra.mxu0 0.0
  %213 = vmatprep.subr.mxu0 0.0
  %214 = vmatpush1.msra.mxu0 0.0
  %215 = vmatprep.subr.mxu0 0.0
  %216 = vmatpush1.msra.mxu0 0.0
  %217 = vmatprep.subr.mxu0 0.0
  %218 = vmatpush1.msra.mxu0 0.0
  %219 = vmatprep.subr.mxu0 0.0
  %220 = vmatpush1.msra.mxu0 0.0
  %221 = vmatprep.subr.mxu0 0.0
  %222 = vmatpush1.msra.mxu0 0.0
  %223 = vmatprep.subr.mxu0 0.0
  %224 = vmatpush1.msra.mxu0 0.0
  %225 = vmatprep.subr.mxu0 0.0
  %226 = vmatpush1.msra.mxu0 0.0
  %227 = vmatprep.subr.mxu0 0.0
  %228 = vmatpush1.msra.mxu0 0.0
  %229 = vmatprep.subr.mxu0 0.0
  %230 = vmatpush1.msra.mxu0 0.0
  %231 = vmatprep.subr.mxu0 0.0
  %232 = vmatpush1.msra.mxu0 0.0
  %233 = vmatprep.subr.mxu0 0.0
  %234 = vmatpush1.msra.mxu0 0.0
  %235 = vmatprep.subr.mxu0 0.0
  %236 = vmatpush1.msra.mxu0 0.0
  %237 = vmatprep.subr.mxu0 0.0
  %238 = vmatpush1.msra.mxu0 0.0
  %239 = vmatprep.subr.mxu0 0.0
  %240 = vmatpush1.msra.mxu0 0.0
  %241 = vmatprep.subr.mxu0 0.0
  %242 = vmatpush1.msra.mxu0 0.0
  %243 = vmatprep.subr.mxu0 0.0
  %244 = vmatpush1.msra.mxu0 0.0
  %245 = vmatprep.subr.mxu0 0.0
  %246 = vmatpush1.msra.mxu0 0.0
  %247 = vmatprep.subr.mxu0 0.0
  %248 = vmatpush1.msra.mxu0 0.0
  %249 = vmatprep.subr.mxu0 0.0
  %250 = vmatpush1.msra.mxu0 0.0
  %251 = vmatprep.subr.mxu0 0.0
  %252 = vmatpush1.msra.mxu0 0.0
  %253 = vmatprep.subr.mxu0 0.0
  %254 = vmatpush1.msra.mxu0 0.0
  %255 = vmatprep.subr.mxu0 0.0
  %256 = vmatpush1.msra.mxu0 0.0
  %257 = vmatprep.subr.mxu0 0.0
  %258 = vmatpush1.msra.mxu0 0.0
  %259 = vmatprep.subr.mxu0 0.0
  %260 = vmatpush1.msra.mxu0 0.0
  %261 = vmatprep.subr.mxu0 0.0
  %262 = vmatpush1.msra.mxu0 0.0
  %263 = vmatprep.subr.mxu0 0.0
  %264 = vmatpush1.msra.mxu0 0.0
  %265 = vmatprep.subr.mxu0 0.0
  %266 = vmatpush1.msra.mxu0 0.0
  %267 = vmatprep.subr.mxu0 0.0
  %268 = vmatpush1.msra.mxu0 0.0
  %269 = vmatprep.subr.mxu0 0.0
  %270 = vmatpush1.msra.mxu0 0.0
  %271 = vmatprep.subr.mxu0 0.0
  %272 = vmatpush1.msra.mxu0 0.0
  %273 = vmatprep.mubr.f32.mxu0 0.0
  %274 = vmatmul.mubr.f32.gmra.mrb[0].mxu0 %v203
  %v275 = vpop.f32.mrb[0].mxu0
  %v276 = vadd.f32 0.0, %v275
  %v277 = vpop.f32.mrb[0].mxu0
  %278 = vdwg.mxu0
  %v279 = vmul.f32 %v276, 0.5
  %v280 = vtanh.pop %v279
  %v281 = vadd.f32 %v280, 1.0
  %v282 = vmul.f32 %v281, 0.5
  %v283 = vlaneseq
  %v284 = vshrl.u32 %v283, 7
  %v285 = vsub.s32 0, %v284
  %v286 = vrot.slane %v282, %v285
  %288 = vbcast.lane.b32.xlu0 %v286, 256
  %v289 = vpop.permute.xlu0 %288
  %s291 = sor.u32 256, 8
  %292 = vbcast.lane.b32.xlu0 %v286, %s291
  %v293 = vpop.permute.xlu0 %292
  %s295 = sor.u32 256, 16
  %296 = vbcast.lane.b32.xlu0 %v286, %s295
  %v297 = vpop.permute.xlu0 %296
  %s299 = sor.u32 256, 24
  %300 = vbcast.lane.b32.xlu0 %v286, %s299
  %v301 = vpop.permute.xlu0 %300
  %v302 = vlaneseq
  %v303 = vshrl.u32 %v302, 7
  %v304 = vsub.s32 1, %v303
  %v305 = vrot.slane %v282, %v304
  %307 = vbcast.lane.b32.xlu0 %v305, 256
  %v308 = vpop.permute.xlu0 %307
  %s310 = sor.u32 256, 8
  %311 = vbcast.lane.b32.xlu0 %v305, %s310
  %v312 = vpop.permute.xlu0 %311
  %s314 = sor.u32 256, 16
  %315 = vbcast.lane.b32.xlu0 %v305, %s314
  %v316 = vpop.permute.xlu0 %315
  %s318 = sor.u32 256, 24
  %319 = vbcast.lane.b32.xlu0 %v305, %s318
  %v320 = vpop.permute.xlu0 %319
  %v321 = vmul.f32 %v17, %v289
  %v322 = vmul.f32 %v18, %v289
  %v323 = vmul.f32 %v19, %v293
  %v324 = vmul.f32 %v20, %v293
  %v325 = vmul.f32 %v21, %v297
  %v326 = vmul.f32 %v22, %v297
  %v327 = vmul.f32 %v23, %v301
  %v328 = vmul.f32 %v24, %v301
  %v329 = vmul.f32 %v25, %v308
  %v330 = vmul.f32 %v26, %v308
  %v331 = vmul.f32 %v27, %v312
  %v332 = vmul.f32 %v28, %v312
  %v333 = vmul.f32 %v29, %v316
  %v334 = vmul.f32 %v30, %v316
  %v335 = vmul.f32 %v31, %v320
  %v336 = vmul.f32 %v32, %v320
  %v337 = vadd.f32 %v321, %v323
  %v338 = vadd.f32 %v337, %v325
  %v339 = vadd.f32 %v338, %v327
  %v340 = vrot.slane %v339, 4
  %v341 = vadd.f32 %v339, %v340
  %v342 = vrot.slane %v341, 2
  %v343 = vadd.f32 %v341, %v342
  %v344 = vrot.slane %v343, 1
  %v345 = vadd.f32 %v343, %v344
  %v346 = vadd.f32 %v322, %v324
  %v347 = vadd.f32 %v346, %v326
  %v348 = vadd.f32 %v347, %v328
  %v349 = vrot.slane %v348, 4
  %v350 = vadd.f32 %v348, %v349
  %v351 = vrot.slane %v350, 2
  %v352 = vadd.f32 %v350, %v351
  %v353 = vrot.slane %v352, 1
  %v354 = vadd.f32 %v352, %v353
  %v355 = vadd.f32 %v329, %v331
  %v356 = vadd.f32 %v355, %v333
  %v357 = vadd.f32 %v356, %v335
  %v358 = vrot.slane %v357, 4
  %v359 = vadd.f32 %v357, %v358
  %v360 = vrot.slane %v359, 2
  %v361 = vadd.f32 %v359, %v360
  %v362 = vrot.slane %v361, 1
  %v363 = vadd.f32 %v361, %v362
  %v364 = vadd.f32 %v330, %v332
  %v365 = vadd.f32 %v364, %v334
  %v366 = vadd.f32 %v365, %v336
  %v367 = vrot.slane %v366, 4
  %v368 = vadd.f32 %v366, %v367
  %v369 = vrot.slane %v368, 2
  %v370 = vadd.f32 %v368, %v369
  %v371 = vrot.slane %v370, 1
  %v372 = vadd.f32 %v370, %v371
  %v373 = vrcp.pop 32.0
  %v374 = vmul.f32 %v345, %v373
  %v375 = vmul.f32 %v354, %v373
  %v376 = vmul.f32 %v363, %v373
  %v377 = vmul.f32 %v372, %v373
  %v378 = vmax.f32 %v321, %v323
  %v379 = vmax.f32 %v378, %v325
  %v380 = vmax.f32 %v379, %v327
  %v381 = vrot.slane %v380, 4
  %v382 = vmax.f32 %v380, %v381
  %v383 = vrot.slane %v382, 2
  %v384 = vmax.f32 %v382, %v383
  %v385 = vrot.slane %v384, 1
  %v386 = vmax.f32 %v384, %v385
  %v387 = vmax.f32 %v322, %v324
  %v388 = vmax.f32 %v387, %v326
  %v389 = vmax.f32 %v388, %v328
  %v390 = vrot.slane %v389, 4
  %v391 = vmax.f32 %v389, %v390
  %v392 = vrot.slane %v391, 2
  %v393 = vmax.f32 %v391, %v392
  %v394 = vrot.slane %v393, 1
  %v395 = vmax.f32 %v393, %v394
  %v396 = vmax.f32 %v329, %v331
  %v397 = vmax.f32 %v396, %v333
  %v398 = vmax.f32 %v397, %v335
  %v399 = vrot.slane %v398, 4
  %v400 = vmax.f32 %v398, %v399
  %v401 = vrot.slane %v400, 2
  %v402 = vmax.f32 %v400, %v401
  %v403 = vrot.slane %v402, 1
  %v404 = vmax.f32 %v402, %v403
  %v405 = vmax.f32 %v330, %v332
  %v406 = vmax.f32 %v405, %v334
  %v407 = vmax.f32 %v406, %v336
  %v408 = vrot.slane %v407, 4
  %v409 = vmax.f32 %v407, %v408
  %v410 = vrot.slane %v409, 2
  %v411 = vmax.f32 %v409, %v410
  %v412 = vrot.slane %v411, 1
  %v413 = vmax.f32 %v411, %v412
  %v418 = vsel %vm124, %v376, %v374
  %v419 = vsel %vm124, %v377, %v375
  %v426 = vsel %vm124, %v404, %v386
  %v427 = vsel %vm124, %v413, %v395
  %v430 = vld [vmem:[%s3] sm:$0xff]
  %v431 = vld [vmem:[%s3 + $0x8] sm:$0xff]
  %v432 = vld [vmem:[%s3 + $0x10] sm:$0xff]
  %v433 = vld [vmem:[%s3 + $0x18] sm:$0xff]
  %v434 = vld [vmem:[%s3 + $0x20] sm:$0xff]
  %v435 = vld [vmem:[%s3 + $0x28] sm:$0xff]
  %v436 = vld [vmem:[%s3 + $0x30] sm:$0xff]
  %v437 = vld [vmem:[%s3 + $0x38] sm:$0xff]
  %v438 = vld [vmem:[%s3 + $0x40] sm:$0xff]
  %v439 = vld [vmem:[%s3 + $0x48] sm:$0xff]
  %v440 = vld [vmem:[%s3 + $0x50] sm:$0xff]
  %v441 = vld [vmem:[%s3 + $0x58] sm:$0xff]
  %v442 = vld [vmem:[%s3 + $0x60] sm:$0xff]
  %v443 = vld [vmem:[%s3 + $0x68] sm:$0xff]
  %v444 = vld [vmem:[%s3 + $0x70] sm:$0xff]
  %v445 = vld [vmem:[%s3 + $0x78] sm:$0xff]
  %v446 = vld [vmem:[%s3 + $0x80] sm:$0xff]
  %v447 = vld [vmem:[%s3 + $0x88] sm:$0xff]
  %v448 = vld [vmem:[%s3 + $0x90] sm:$0xff]
  %v449 = vld [vmem:[%s3 + $0x98] sm:$0xff]
  %v450 = vld [vmem:[%s3 + $0xa0] sm:$0xff]
  %v451 = vld [vmem:[%s3 + $0xa8] sm:$0xff]
  %v452 = vld [vmem:[%s3 + $0xb0] sm:$0xff]
  %v453 = vld [vmem:[%s3 + $0xb8] sm:$0xff]
  %v454 = vld [vmem:[%s3 + $0xc0] sm:$0xff]
  %v455 = vld [vmem:[%s3 + $0xc8] sm:$0xff]
  %v456 = vld [vmem:[%s3 + $0xd0] sm:$0xff]
  %v457 = vld [vmem:[%s3 + $0xd8] sm:$0xff]
  %v458 = vld [vmem:[%s3 + $0xe0] sm:$0xff]
  %v459 = vld [vmem:[%s3 + $0xe8] sm:$0xff]
  %v460 = vld [vmem:[%s3 + $0xf0] sm:$0xff]
  %v461 = vld [vmem:[%s3 + $0xf8] sm:$0xff]
  %v462 = vld [vmem:[%s3 + $0x100] sm:$0xff]
  %v463 = vld [vmem:[%s3 + $0x108] sm:$0xff]
  %v464 = vld [vmem:[%s3 + $0x110] sm:$0xff]
  %v465 = vld [vmem:[%s3 + $0x118] sm:$0xff]
  %v466 = vld [vmem:[%s3 + $0x120] sm:$0xff]
  %v467 = vld [vmem:[%s3 + $0x128] sm:$0xff]
  %v468 = vld [vmem:[%s3 + $0x130] sm:$0xff]
  %v469 = vld [vmem:[%s3 + $0x138] sm:$0xff]
  %v470 = vld [vmem:[%s3 + $0x140] sm:$0xff]
  %v471 = vld [vmem:[%s3 + $0x148] sm:$0xff]
  %v472 = vld [vmem:[%s3 + $0x150] sm:$0xff]
  %v473 = vld [vmem:[%s3 + $0x158] sm:$0xff]
  %v474 = vld [vmem:[%s3 + $0x160] sm:$0xff]
  %v475 = vld [vmem:[%s3 + $0x168] sm:$0xff]
  %v476 = vld [vmem:[%s3 + $0x170] sm:$0xff]
  %v477 = vld [vmem:[%s3 + $0x178] sm:$0xff]
  %v478 = vld [vmem:[%s3 + $0x180] sm:$0xff]
  %v479 = vld [vmem:[%s3 + $0x188] sm:$0xff]
  %v480 = vld [vmem:[%s3 + $0x190] sm:$0xff]
  %v481 = vld [vmem:[%s3 + $0x198] sm:$0xff]
  %v482 = vld [vmem:[%s3 + $0x1a0] sm:$0xff]
  %v483 = vld [vmem:[%s3 + $0x1a8] sm:$0xff]
  %v484 = vld [vmem:[%s3 + $0x1b0] sm:$0xff]
  %v485 = vld [vmem:[%s3 + $0x1b8] sm:$0xff]
  %v486 = vld [vmem:[%s3 + $0x1c0] sm:$0xff]
  %v487 = vld [vmem:[%s3 + $0x1c8] sm:$0xff]
  %v488 = vld [vmem:[%s3 + $0x1d0] sm:$0xff]
  %v489 = vld [vmem:[%s3 + $0x1d8] sm:$0xff]
  %v490 = vld [vmem:[%s3 + $0x1e0] sm:$0xff]
  %v491 = vld [vmem:[%s3 + $0x1e8] sm:$0xff]
  %v492 = vld [vmem:[%s3 + $0x1f0] sm:$0xff]
  %v493 = vld [vmem:[%s3 + $0x1f8] sm:$0xff]
  %v494 = vld [vmem:[%s3 + $0x200] sm:$0xff]
  %v495 = vld [vmem:[%s3 + $0x208] sm:$0xff]
  %v496 = vld [vmem:[%s3 + $0x210] sm:$0xff]
  %v497 = vld [vmem:[%s3 + $0x218] sm:$0xff]
  %v498 = vld [vmem:[%s3 + $0x220] sm:$0xff]
  %v499 = vld [vmem:[%s3 + $0x228] sm:$0xff]
  %v500 = vld [vmem:[%s3 + $0x230] sm:$0xff]
  %v501 = vld [vmem:[%s3 + $0x238] sm:$0xff]
  %v502 = vld [vmem:[%s3 + $0x240] sm:$0xff]
  %v503 = vld [vmem:[%s3 + $0x248] sm:$0xff]
  %v504 = vld [vmem:[%s3 + $0x250] sm:$0xff]
  %v505 = vld [vmem:[%s3 + $0x258] sm:$0xff]
  %v506 = vld [vmem:[%s3 + $0x260] sm:$0xff]
  %v507 = vld [vmem:[%s3 + $0x268] sm:$0xff]
  %v508 = vld [vmem:[%s3 + $0x270] sm:$0xff]
  %v509 = vld [vmem:[%s3 + $0x278] sm:$0xff]
  %v510 = vld [vmem:[%s3 + $0x280] sm:$0xff]
  %v511 = vld [vmem:[%s3 + $0x288] sm:$0xff]
  %v512 = vld [vmem:[%s3 + $0x290] sm:$0xff]
  %v513 = vld [vmem:[%s3 + $0x298] sm:$0xff]
  %v514 = vld [vmem:[%s3 + $0x2a0] sm:$0xff]
  %v515 = vld [vmem:[%s3 + $0x2a8] sm:$0xff]
  %v516 = vld [vmem:[%s3 + $0x2b0] sm:$0xff]
  %v517 = vld [vmem:[%s3 + $0x2b8] sm:$0xff]
  %v518 = vld [vmem:[%s3 + $0x2c0] sm:$0xff]
  %v519 = vld [vmem:[%s3 + $0x2c8] sm:$0xff]
  %v520 = vld [vmem:[%s3 + $0x2d0] sm:$0xff]
  %v521 = vld [vmem:[%s3 + $0x2d8] sm:$0xff]
  %v522 = vld [vmem:[%s3 + $0x2e0] sm:$0xff]
  %v523 = vld [vmem:[%s3 + $0x2e8] sm:$0xff]
  %v524 = vld [vmem:[%s3 + $0x2f0] sm:$0xff]
  %v525 = vld [vmem:[%s3 + $0x2f8] sm:$0xff]
  %v526 = vld [vmem:[%s3 + $0x300] sm:$0xff]
  %v527 = vld [vmem:[%s3 + $0x308] sm:$0xff]
  %v528 = vld [vmem:[%s3 + $0x310] sm:$0xff]
  %v529 = vld [vmem:[%s3 + $0x318] sm:$0xff]
  %v530 = vld [vmem:[%s3 + $0x320] sm:$0xff]
  %v531 = vld [vmem:[%s3 + $0x328] sm:$0xff]
  %v532 = vld [vmem:[%s3 + $0x330] sm:$0xff]
  %v533 = vld [vmem:[%s3 + $0x338] sm:$0xff]
  %v534 = vld [vmem:[%s3 + $0x340] sm:$0xff]
  %v535 = vld [vmem:[%s3 + $0x348] sm:$0xff]
  %v536 = vld [vmem:[%s3 + $0x350] sm:$0xff]
  %v537 = vld [vmem:[%s3 + $0x358] sm:$0xff]
  %v538 = vld [vmem:[%s3 + $0x360] sm:$0xff]
  %v539 = vld [vmem:[%s3 + $0x368] sm:$0xff]
  %v540 = vld [vmem:[%s3 + $0x370] sm:$0xff]
  %v541 = vld [vmem:[%s3 + $0x378] sm:$0xff]
  %v542 = vld [vmem:[%s3 + $0x380] sm:$0xff]
  %v543 = vld [vmem:[%s3 + $0x388] sm:$0xff]
  %v544 = vld [vmem:[%s3 + $0x390] sm:$0xff]
  %v545 = vld [vmem:[%s3 + $0x398] sm:$0xff]
  %v546 = vld [vmem:[%s3 + $0x3a0] sm:$0xff]
  %v547 = vld [vmem:[%s3 + $0x3a8] sm:$0xff]
  %v548 = vld [vmem:[%s3 + $0x3b0] sm:$0xff]
  %v549 = vld [vmem:[%s3 + $0x3b8] sm:$0xff]
  %v550 = vld [vmem:[%s3 + $0x3c0] sm:$0xff]
  %v551 = vld [vmem:[%s3 + $0x3c8] sm:$0xff]
  %v552 = vld [vmem:[%s3 + $0x3d0] sm:$0xff]
  %v553 = vld [vmem:[%s3 + $0x3d8] sm:$0xff]
  %v554 = vld [vmem:[%s3 + $0x3e0] sm:$0xff]
  %v555 = vld [vmem:[%s3 + $0x3e8] sm:$0xff]
  %v556 = vld [vmem:[%s3 + $0x3f0] sm:$0xff]
  %v557 = vld [vmem:[%s3 + $0x3f8] sm:$0xff]
  %558 = vmatprep.subr.mxu0 %v431
  %559 = vmatpush1.msra.mxu0 %v430
  %560 = vmatprep.subr.mxu0 %v433
  %561 = vmatpush1.msra.mxu0 %v432
  %562 = vmatprep.subr.mxu0 %v435
  %563 = vmatpush1.msra.mxu0 %v434
  %564 = vmatprep.subr.mxu0 %v437
  %565 = vmatpush1.msra.mxu0 %v436
  %566 = vmatprep.subr.mxu0 %v439
  %567 = vmatpush1.msra.mxu0 %v438
  %568 = vmatprep.subr.mxu0 %v441
  %569 = vmatpush1.msra.mxu0 %v440
  %570 = vmatprep.subr.mxu0 %v443
  %571 = vmatpush1.msra.mxu0 %v442
  %572 = vmatprep.subr.mxu0 %v445
  %573 = vmatpush1.msra.mxu0 %v444
  %574 = vmatprep.subr.mxu0 %v447
  %575 = vmatpush1.msra.mxu0 %v446
  %576 = vmatprep.subr.mxu0 %v449
  %577 = vmatpush1.msra.mxu0 %v448
  %578 = vmatprep.subr.mxu0 %v451
  %579 = vmatpush1.msra.mxu0 %v450
  %580 = vmatprep.subr.mxu0 %v453
  %581 = vmatpush1.msra.mxu0 %v452
  %582 = vmatprep.subr.mxu0 %v455
  %583 = vmatpush1.msra.mxu0 %v454
  %584 = vmatprep.subr.mxu0 %v457
  %585 = vmatpush1.msra.mxu0 %v456
  %586 = vmatprep.subr.mxu0 %v459
  %587 = vmatpush1.msra.mxu0 %v458
  %588 = vmatprep.subr.mxu0 %v461
  %589 = vmatpush1.msra.mxu0 %v460
  %590 = vmatprep.subr.mxu0 %v463
  %591 = vmatpush1.msra.mxu0 %v462
  %592 = vmatprep.subr.mxu0 %v465
  %593 = vmatpush1.msra.mxu0 %v464
  %594 = vmatprep.subr.mxu0 %v467
  %595 = vmatpush1.msra.mxu0 %v466
  %596 = vmatprep.subr.mxu0 %v469
  %597 = vmatpush1.msra.mxu0 %v468
  %598 = vmatprep.subr.mxu0 %v471
  %599 = vmatpush1.msra.mxu0 %v470
  %600 = vmatprep.subr.mxu0 %v473
  %601 = vmatpush1.msra.mxu0 %v472
  %602 = vmatprep.subr.mxu0 %v475
  %603 = vmatpush1.msra.mxu0 %v474
  %604 = vmatprep.subr.mxu0 %v477
  %605 = vmatpush1.msra.mxu0 %v476
  %606 = vmatprep.subr.mxu0 %v479
  %607 = vmatpush1.msra.mxu0 %v478
  %608 = vmatprep.subr.mxu0 %v481
  %609 = vmatpush1.msra.mxu0 %v480
  %610 = vmatprep.subr.mxu0 %v483
  %611 = vmatpush1.msra.mxu0 %v482
  %612 = vmatprep.subr.mxu0 %v485
  %613 = vmatpush1.msra.mxu0 %v484
  %614 = vmatprep.subr.mxu0 %v487
  %615 = vmatpush1.msra.mxu0 %v486
  %616 = vmatprep.subr.mxu0 %v489
  %617 = vmatpush1.msra.mxu0 %v488
  %618 = vmatprep.subr.mxu0 %v491
  %619 = vmatpush1.msra.mxu0 %v490
  %620 = vmatprep.subr.mxu0 %v493
  %621 = vmatpush1.msra.mxu0 %v492
  %622 = vmatprep.mubr.f32.mxu0 %v419
  %623 = vmatmul.mubr.f32.gmra.mrb[0].mxu0 %v418
  %v624 = vpop.f32.mrb[0].mxu0
  %v625 = vadd.f32 0.0, %v624
  %v626 = vpop.f32.mrb[0].mxu0
  %v627 = vadd.f32 0.0, %v626
  %628 = vdwg.mxu0
  %629 = vmatprep.subr.mxu0 %v495
  %630 = vmatpush1.msra.mxu0 %v494
  %631 = vmatprep.subr.mxu0 %v497
  %632 = vmatpush1.msra.mxu0 %v496
  %633 = vmatprep.subr.mxu0 %v499
  %634 = vmatpush1.msra.mxu0 %v498
  %635 = vmatprep.subr.mxu0 %v501
  %636 = vmatpush1.msra.mxu0 %v500
  %637 = vmatprep.subr.mxu0 %v503
  %638 = vmatpush1.msra.mxu0 %v502
  %639 = vmatprep.subr.mxu0 %v505
  %640 = vmatpush1.msra.mxu0 %v504
  %641 = vmatprep.subr.mxu0 %v507
  %642 = vmatpush1.msra.mxu0 %v506
  %643 = vmatprep.subr.mxu0 %v509
  %644 = vmatpush1.msra.mxu0 %v508
  %645 = vmatprep.subr.mxu0 %v511
  %646 = vmatpush1.msra.mxu0 %v510
  %647 = vmatprep.subr.mxu0 %v513
  %648 = vmatpush1.msra.mxu0 %v512
  %649 = vmatprep.subr.mxu0 %v515
  %650 = vmatpush1.msra.mxu0 %v514
  %651 = vmatprep.subr.mxu0 %v517
  %652 = vmatpush1.msra.mxu0 %v516
  %653 = vmatprep.subr.mxu0 %v519
  %654 = vmatpush1.msra.mxu0 %v518
  %655 = vmatprep.subr.mxu0 %v521
  %656 = vmatpush1.msra.mxu0 %v520
  %657 = vmatprep.subr.mxu0 %v523
  %658 = vmatpush1.msra.mxu0 %v522
  %659 = vmatprep.subr.mxu0 %v525
  %660 = vmatpush1.msra.mxu0 %v524
  %661 = vmatprep.subr.mxu0 %v527
  %662 = vmatpush1.msra.mxu0 %v526
  %663 = vmatprep.subr.mxu0 %v529
  %664 = vmatpush1.msra.mxu0 %v528
  %665 = vmatprep.subr.mxu0 %v531
  %666 = vmatpush1.msra.mxu0 %v530
  %667 = vmatprep.subr.mxu0 %v533
  %668 = vmatpush1.msra.mxu0 %v532
  %669 = vmatprep.subr.mxu0 %v535
  %670 = vmatpush1.msra.mxu0 %v534
  %671 = vmatprep.subr.mxu0 %v537
  %672 = vmatpush1.msra.mxu0 %v536
  %673 = vmatprep.subr.mxu0 %v539
  %674 = vmatpush1.msra.mxu0 %v538
  %675 = vmatprep.subr.mxu0 %v541
  %676 = vmatpush1.msra.mxu0 %v540
  %677 = vmatprep.subr.mxu0 %v543
  %678 = vmatpush1.msra.mxu0 %v542
  %679 = vmatprep.subr.mxu0 %v545
  %680 = vmatpush1.msra.mxu0 %v544
  %681 = vmatprep.subr.mxu0 %v547
  %682 = vmatpush1.msra.mxu0 %v546
  %683 = vmatprep.subr.mxu0 %v549
  %684 = vmatpush1.msra.mxu0 %v548
  %685 = vmatprep.subr.mxu0 %v551
  %686 = vmatpush1.msra.mxu0 %v550
  %687 = vmatprep.subr.mxu0 %v553
  %688 = vmatpush1.msra.mxu0 %v552
  %689 = vmatprep.subr.mxu0 %v555
  %690 = vmatpush1.msra.mxu0 %v554
  %691 = vmatprep.subr.mxu0 %v557
  %692 = vmatpush1.msra.mxu0 %v556
  %693 = vmatprep.mubr.f32.mxu0 %v427
  %694 = vmatmul.mubr.f32.gmra.mrb[0].mxu0 %v426
  %v695 = vpop.f32.mrb[0].mxu0
  %v696 = vadd.f32 %v625, %v695
  %v697 = vpop.f32.mrb[0].mxu0
  %v698 = vadd.f32 %v627, %v697
  %699 = vdwg.mxu0
  %v700 = vmul.f32 %v696, 0.5
  %v701 = vmul.f32 %v698, 0.5
  %v702 = vtanh.pop %v700
  %v703 = vtanh.pop %v701
  %v704 = vadd.f32 %v702, 1.0
  %v705 = vadd.f32 %v703, 1.0
  %v706 = vmul.f32 %v704, 0.5
  %v707 = vmul.f32 %v705, 0.5
  %v710 = vcombine.low %v706, %v707
  %v712 = vunpack.c.l.s4 1966171168
  %v713 = vunpack.c.0.s8 %v712
  %v714 = vlaneseq
  %v715 = vshrl.u32 %v714, 7
  %v716 = vsub.s32 %v713, %v715
  %v717 = vrot.slane %v710, %v716
  %v718 = vcombine.high %v717, %v717
  %v720 = vunpack.c.l.s4 1966171168
  %v721 = vunpack.c.0.s8 %v720
  %v722 = vlaneseq
  %v723 = vshrl.u32 %v722, 7
  %v724 = vsub.s32 %v721, %v723
  %v725 = vrot.slane %v717, %v724
  %v727 = vunpack.c.l.s4 1966171168
  %v728 = vunpack.c.0.s8 %v727
  %v729 = vlaneseq
  %v730 = vshrl.u32 %v729, 7
  %v731 = vsub.s32 %v728, %v730
  %v732 = vrot.slane %v718, %v731
  %v733 = vlaneseq
  %v734 = vshrl.u32 %v733, 7
  %v735 = vsub.s32 0, %v734
  %v736 = vrot.slane %v725, %v735
  %v737 = vlaneseq
  %v738 = vshrl.u32 %v737, 7
  %v739 = vsub.s32 1, %v738
  %v740 = vrot.slane %v725, %v739
  %v741 = vlaneseq
  %v742 = vshrl.u32 %v741, 7
  %v743 = vsub.s32 0, %v742
  %v744 = vrot.slane %v732, %v743
  %v745 = vlaneseq
  %v746 = vshrl.u32 %v745, 7
  %v747 = vsub.s32 1, %v746
  %v748 = vrot.slane %v732, %v747
  %v753 = vmul.f32 %v321, %v736
  %v754 = vmul.f32 %v322, %v740
  %v755 = vmul.f32 %v323, %v736
  %v756 = vmul.f32 %v324, %v740
  %v757 = vmul.f32 %v325, %v736
  %v758 = vmul.f32 %v326, %v740
  %v759 = vmul.f32 %v327, %v736
  %v760 = vmul.f32 %v328, %v740
  %v761 = vmul.f32 %v329, %v744
  %v762 = vmul.f32 %v330, %v748
  %v763 = vmul.f32 %v331, %v744
  %v764 = vmul.f32 %v332, %v748
  %v765 = vmul.f32 %v333, %v744
  %v766 = vmul.f32 %v334, %v748
  %v767 = vmul.f32 %v335, %v744
  %v768 = vmul.f32 %v336, %v748
  %769 = vst [vmem:[%s4] sm:$0xff] %v753
  %770 = vst [vmem:[%s4 + $0x8] sm:$0xff] %v754
  %771 = vst [vmem:[%s4 + $0x10] sm:$0xff] %v755
  %772 = vst [vmem:[%s4 + $0x18] sm:$0xff] %v756
  %773 = vst [vmem:[%s4 + $0x20] sm:$0xff] %v757
  %774 = vst [vmem:[%s4 + $0x28] sm:$0xff] %v758
  %775 = vst [vmem:[%s4 + $0x30] sm:$0xff] %v759
  %776 = vst [vmem:[%s4 + $0x38] sm:$0xff] %v760
  %777 = vst [vmem:[%s4 + $0x40] sm:$0xff] %v761
  %778 = vst [vmem:[%s4 + $0x48] sm:$0xff] %v762
  %779 = vst [vmem:[%s4 + $0x50] sm:$0xff] %v763
  %780 = vst [vmem:[%s4 + $0x58] sm:$0xff] %v764
  %781 = vst [vmem:[%s4 + $0x60] sm:$0xff] %v765
  %782 = vst [vmem:[%s4 + $0x68] sm:$0xff] %v766
  %783 = vst [vmem:[%s4 + $0x70] sm:$0xff] %v767
  %784 = vst [vmem:[%s4 + $0x78] sm:$0xff] %v768
  // Predicated region
  $region18: #{content_guided_attention.1} parent=0 // pred_check
    _
  $region19: #{content_guided_attention.1} parent=0 // pred_check_branch
    %786 = sbr.rel (0) target = $region21
  $region20: #{content_guided_attention.1} parent=0 // pred_region
    _
  $region21: #{content_guided_attention.1} parent=0 // pred_fallthru
    _
  // Predicated region
  $region22: #{content_guided_attention.1} parent=0 // pred_check
    _
  $region23: #{content_guided_attention.1} parent=0 // pred_check_branch
    %788 = sbr.rel (0) target = $region25
  $region24: #{content_guided_attention.1} parent=0 // pred_region
    _
  $region25: #{content_guided_attention.1} parent=0 // pred_fallthru
    _

</llo_original>
